<compile_context>
chip_gen: v5e
topology: v5e:2x2
jax: 0.10.0
libtpu: 0.0.40
codegen_flags: <defaults>
</compile_context>

<pallas_src>
import jax
import jax.numpy as jnp
from jax.experimental import pallas as pl
from jax.experimental.pallas import tpu as pltpu


def _attention_kernel(x_ref, w1_ref, w2_ref, o_ref):
    # x_ref : (C, TP)   pixel tile (channels on sublanes, pixels on lanes)
    # w1_ref: (Cr, C)   conv1 weight [out, in]  (resident)
    # w2_ref: (C, Cr)   conv2 weight [out, in]  (resident)
    # o_ref : (C, TP)

    # Conv2d(C, C//8, 1, bias=False) + ReLU  ==  relu(w1 @ x); f32 accumulation.
    h = jnp.dot(w1_ref[...], x_ref[...], preferred_element_type=jnp.float32)
    h = jnp.maximum(h, 0.0)

    # Conv2d(C//8, C, 1, bias=False)  ==  w2 @ h (feed MXU in the weight dtype).
    a = jnp.dot(w2_ref[...], h.astype(w2_ref.dtype),
                preferred_element_type=jnp.float32)        # (C, TP) f32

    # Sigmoid via a single transcendental: sigmoid(a) = 0.5 * (tanh(a/2) + 1).
    a = 0.5 * (jnp.tanh(0.5 * a) + 1.0)

    # Gate the input. Re-read x from VMEM here (cheap vld) instead of keeping
    # the tile live across both matmuls + tanh.
    o_ref[...] = (x_ref[...] * a.astype(o_ref.dtype)).astype(o_ref.dtype)


def _round_up(x, m):
    return ((x + m - 1) // m) * m


def attention_block(x_nchw, w1, w2, *, tile_pix=None):
    """x_nchw: (N, C, H, W); w1: (C//8, C) conv1 weight [out,in]; w2: (C, C//8)."""
    N, C, H, W = x_nchw.shape
    Cr = w1.shape[0]
    assert w1.shape == (Cr, C) and w2.shape == (C, Cr)

    P = H * W
    itemsize = jnp.dtype(x_nchw.dtype).itemsize
    # Free, contiguous reshape -- no HBM transpose traffic, no pad/slice copies.
    x = x_nchw.reshape(N, C, P)

    if tile_pix is None:
        # Target ~4 MiB per input block (lane-dense), capped at 32768 lanes.
        target = max(128, (((4 << 20) // (C * itemsize)) // 128) * 128)
        target = min(target, 32768)
        tile_pix = min(_round_up(P, 128), target)

        # v7x has 2 TensorCores: nudge toward an even total grid-step count so
        # both cores get work on tiny grids (best effort, correctness-neutral).
        n_blk = pl.cdiv(P, tile_pix)
        if (N * n_blk) % 2 == 1 and P > 128:
            tp2 = max(128, _round_up(pl.cdiv(P, n_blk + 1), 128))
            if (N * pl.cdiv(P, tp2)) % 2 == 0:
                tile_pix = tp2
    tile_pix = max(128, tile_pix)

    n_pix_blocks = pl.cdiv(P, tile_pix)

    block_bytes = C * tile_pix * itemsize
    w_bytes = (w1.size * jnp.dtype(w1.dtype).itemsize
               + w2.size * jnp.dtype(w2.dtype).itemsize)
    # Double-buffered in + out blocks, resident weights, plus slack. Raise the
    # scoped-VMEM limit (v5e defaults to 16 MiB) but stay under v7x's 64 MiB.
    vmem_limit = int(min(64 << 20, max(32 << 20, 4 * block_bytes + 4 * w_bytes + (4 << 20))))

    cost = pl.CostEstimate(
        flops=4 * N * C * Cr * P,
        transcendentals=N * C * P,
        bytes_accessed=2 * N * C * P * itemsize + w_bytes,
    )

    out = pl.pallas_call(
        _attention_kernel,
        out_shape=jax.ShapeDtypeStruct((N, C, P), x.dtype),
        grid_spec=pltpu.PrefetchScalarGridSpec(
            num_scalar_prefetch=0,
            grid=(N, n_pix_blocks),
            in_specs=[
                pl.BlockSpec((pl.Squeezed(), C, tile_pix), lambda n, p: (n, 0, p)),  # x tile
                pl.BlockSpec((Cr, C), lambda n, p: (0, 0)),                           # w1 resident
                pl.BlockSpec((C, Cr), lambda n, p: (0, 0)),                           # w2 resident
            ],
            out_specs=pl.BlockSpec((pl.Squeezed(), C, tile_pix), lambda n, p: (n, 0, p)),
        ),
        compiler_params=pltpu.CompilerParams(
            dimension_semantics=("parallel", "parallel"),
            vmem_limit_bytes=vmem_limit,
        ),
        cost_estimate=cost,
    )(x, w1, w2)

    return out.reshape(N, C, H, W)


def attention_block_ref(x_nchw, w1, w2):
    """Pure-JAX reference matching the PyTorch semantics."""
    h = jnp.einsum("nchw,oc->nohw", x_nchw, w1)
    h = jnp.maximum(h, 0.0)
    a = jnp.einsum("nchw,oc->nohw", h, w2)
    a = jax.nn.sigmoid(a)
    return x_nchw * a


if __name__ == "__main__":
    key = jax.random.PRNGKey(0)
    k_x, k_w1, k_w2 = jax.random.split(key, 3)

    N, C, H, W = 2, 32, 16, 16          # in_channels=32 -> hidden = 32 // 8 = 4
    Cr = C // 8

    x = jax.random.normal(k_x, (N, C, H, W), dtype=jnp.float32)
    # Conv weights in [out_ch, in_ch] layout (1x1 kernel squeezed).
    w1 = jax.random.normal(k_w1, (Cr, C), dtype=jnp.float32) * 0.1
    w2 = jax.random.normal(k_w2, (C, Cr), dtype=jnp.float32) * 0.1

    out = attention_block(x, w1, w2)
    out = jax.block_until_ready(out)

    ref = attention_block_ref(x, w1, w2)
    assert out.shape == x.shape
    assert jnp.allclose(out, ref, atol=1e-5, rtol=1e-5), "mismatch vs reference"

    print("KERNEL_OK")
</pallas_src>

<mosaic_0001>
module attributes {stable_mosaic.version = 11 : i64} {
  func.func @_attention_kernel(%arg0: i32, %arg1: i32, %arg2: memref<1x32x256xf32, #tpu.memory_space<vmem>>, %arg3: memref<4x32xf32, #tpu.memory_space<vmem>>, %arg4: memref<32x4xf32, #tpu.memory_space<vmem>>, %arg5: memref<1x32x256xf32, #tpu.memory_space<vmem>>) attributes {dimension_semantics = [#tpu.dimension_semantics<parallel>, #tpu.dimension_semantics<parallel>], iteration_bounds = array<i64: 2, 1>, scalar_prefetch = 0 : i64, scratch_operands = 0 : i64, tpu.core_type = #tpu.core_type<tc>, window_params = [{transform_indices = @transform_0, window_bounds = array<i64: 1, 32, 256>}, {pipeline_mode = #tpu.pipeline_mode<synchronous>, transform_indices = @transform_1, window_bounds = array<i64: 4, 32>}, {pipeline_mode = #tpu.pipeline_mode<synchronous>, transform_indices = @transform_2, window_bounds = array<i64: 32, 4>}, {transform_indices = @transform_3, window_bounds = array<i64: 1, 32, 256>}]} {
    %c0 = arith.constant 0 : index
    %c0_0 = arith.constant 0 : index
    %0 = vector.load %arg3[%c0, %c0_0] : memref<4x32xf32, #tpu.memory_space<vmem>>, vector<4x32xf32>
    %c0_1 = arith.constant 0 : index
    %c0_2 = arith.constant 0 : index
    %c0_3 = arith.constant 0 : index
    %1 = vector.load %arg2[%c0_1, %c0_2, %c0_3] : memref<1x32x256xf32, #tpu.memory_space<vmem>>, vector<1x32x256xf32>
    %2 = vector.shape_cast %1 : vector<1x32x256xf32> to vector<32x256xf32>
    %cst = arith.constant dense<0.000000e+00> : vector<4x256xf32>
    %3 = tpu.matmul %0, %2, %cst {dimension_numbers = #tpu.dot_dimension_numbers<[1], [0], [0], [1], [0, 0, 1, 1], [], []>} : vector<4x32xf32>, vector<32x256xf32>, vector<4x256xf32> -> vector<4x256xf32>
    %cst_4 = arith.constant 0.000000e+00 : f32
    %4 = vector.broadcast %cst_4 : f32 to vector<4x256xf32>
    %5 = arith.maximumf %3, %4 : vector<4x256xf32>
    %c0_5 = arith.constant 0 : index
    %c0_6 = arith.constant 0 : index
    %6 = vector.load %arg4[%c0_5, %c0_6] : memref<32x4xf32, #tpu.memory_space<vmem>>, vector<32x4xf32>
    %cst_7 = arith.constant dense<0.000000e+00> : vector<32x256xf32>
    %7 = tpu.matmul %6, %5, %cst_7 {dimension_numbers = #tpu.dot_dimension_numbers<[1], [0], [0], [1], [0, 0, 1, 1], [], []>} : vector<32x4xf32>, vector<4x256xf32>, vector<32x256xf32> -> vector<32x256xf32>
    %cst_8 = arith.constant 5.000000e-01 : f32
    %8 = vector.broadcast %cst_8 : f32 to vector<32x256xf32>
    %9 = arith.mulf %8, %7 : vector<32x256xf32>
    %10 = math.tanh %9 : vector<32x256xf32>
    %cst_9 = arith.constant 1.000000e+00 : f32
    %11 = vector.broadcast %cst_9 : f32 to vector<32x256xf32>
    %12 = arith.addf %10, %11 : vector<32x256xf32>
    %cst_10 = arith.constant 5.000000e-01 : f32
    %13 = vector.broadcast %cst_10 : f32 to vector<32x256xf32>
    %14 = arith.mulf %13, %12 : vector<32x256xf32>
    %c0_11 = arith.constant 0 : index
    %c0_12 = arith.constant 0 : index
    %c0_13 = arith.constant 0 : index
    %15 = vector.load %arg2[%c0_11, %c0_12, %c0_13] : memref<1x32x256xf32, #tpu.memory_space<vmem>>, vector<1x32x256xf32>
    %16 = vector.shape_cast %15 : vector<1x32x256xf32> to vector<32x256xf32>
    %17 = arith.mulf %16, %14 : vector<32x256xf32>
    %c0_14 = arith.constant 0 : index
    %c0_15 = arith.constant 0 : index
    %c0_16 = arith.constant 0 : index
    %18 = vector.load %arg5[%c0_14, %c0_15, %c0_16] : memref<1x32x256xf32, #tpu.memory_space<vmem>>, vector<1x32x256xf32>
    %19 = vector.shape_cast %18 : vector<1x32x256xf32> to vector<32x256xf32>
    %20 = vector.shape_cast %17 : vector<32x256xf32> to vector<1x32x256xf32>
    tpu.vector_store %arg5[%c0_14, %c0_15, %c0_16], %20 {strides = array<i32>} : memref<1x32x256xf32, #tpu.memory_space<vmem>>, vector<1x32x256xf32>,
    return
  }
  func.func @transform_0(%arg0: i32, %arg1: i32) -> (i32, i32, i32) {
    %c0_i32 = arith.constant 0 : i32
    %c0_i32_0 = arith.constant 0 : i32
    return %arg0, %c0_i32, %arg1 : i32, i32, i32
  }
  func.func @transform_1(%arg0: i32, %arg1: i32) -> (i32, i32) {
    %c0_i32 = arith.constant 0 : i32
    %c0_i32_0 = arith.constant 0 : i32
    %c0_i32_1 = arith.constant 0 : i32
    return %c0_i32, %c0_i32_0 : i32, i32
  }
  func.func @transform_2(%arg0: i32, %arg1: i32) -> (i32, i32) {
    %c0_i32 = arith.constant 0 : i32
    %c0_i32_0 = arith.constant 0 : i32
    %c0_i32_1 = arith.constant 0 : i32
    return %c0_i32, %c0_i32_0 : i32, i32
  }
  func.func @transform_3(%arg0: i32, %arg1: i32) -> (i32, i32, i32) {
    %c0_i32 = arith.constant 0 : i32
    %c0_i32_0 = arith.constant 0 : i32
    return %arg0, %c0_i32, %arg1 : i32, i32, i32
  }
}

</mosaic_0001>

<llo_original>
// kernel: tpu_custom_call.1
$region0: #{tpu_custom_call.1}
  #allocation0 [shape = 'u32[]', space=smem, size = 0x4, offset = 0x4, fixed_abs, tag = 'smem constant byte address 0x4 - core index']
  #allocation1 [shape = 'u32[72,128]{1,0:T(1,128)}', space=vmem, size = 0x9000, scoped, tag = 'internal scratch']
  %s0 = inlined_call_operand.hbm [shape: f32[2,32,256], index: 0, kind: input, shape index: {}]
  %s1 = inlined_call_operand.vmem [shape: f32[4,32], index: 1, kind: input, shape index: {}]
  %s2 = inlined_call_operand.vmem [shape: f32[32,4], index: 2, kind: input, shape index: {}]
  %s3 = inlined_call_operand.hbm [shape: f32[2,32,256], index: 3, kind: output, shape index: {}]
  %s4 = sld [smem:[#allocation0]]
  $region49: #{tpu_custom_call.1} parent=0
    _
  %s6 = ssub.s32 1, %s4
  %s7 = scalar_select 0, %s6, %s4
  $region1: #{tpu_custom_call.1} parent=0
    #allocation2 [shape = 'u8[65536]{0}', space=vmem, size = 0x10000, scoped, tag = 'input window, operand 0']
    #allocation3 [shape = 's32[2]{0}', space=sflag, size = 0x8, scoped, tag = 'scoped memory for tpu_custom_call.1']
    #allocation4 [shape = 's32[2]{0}', space=sflag, size = 0x8, scoped, tag = 'scoped memory for tpu_custom_call.1']
    #allocation5 [shape = 'u8[65536]{0}', space=vmem, size = 0x10000, scoped, tag = 'output window, operand 0']
    %8 = vsyncpa [#allocation3], 0
    %s9 = scalar_lea.sflag [#allocation3], 1
    %10 = vsyncpa %s9, 0
    %11 = vsyncpa [#allocation4], 0
    %s12 = scalar_lea.sflag [#allocation4], 1
    %13 = vsyncpa %s12, 0
    loop: start=0, step=1, limit=4
    $region2: #{tpu_custom_call.1} parent=1 // loop_pre_header
      _
    $region3: #{tpu_custom_call.1} parent=1 // loop_header
      %s15 = sphi 0, %s19
      %p16 = scmp.ge.s32.totalorder %s15, 4
      %s22 = sphi 0, %s34
      %s23 = sphi 0, %s30
      %s24 = sphi 0, %s22
      %s25 = sphi 0, %s23
      %s26 = sphi 0, %s24
      %s27 = sphi 0, %s25
      %s39 = sphi 0, %s41
      %s42 = sphi 0, %s39
      %s43 = sphi 0, %s42
      %s59 = sphi 0, %s43
      %s63 = sphi 0, %s63
      %s65 = sphi 0, %s63
      %s66 = sphi 0, %s65
      %s80 = sphi 0, %s66
      %s84 = sphi 0, %s84
      %s86 = sphi 0, %s84
      %s87 = sphi 0, %s86
      %s101 = sphi 0, %s87
      %s109 = sphi 0, %s111
      %s112 = sphi 0, %s109
      %s113 = sphi 0, %s112
      %s129 = sphi 0, %s113
    $region4: #{tpu_custom_call.1} parent=1 // loop_header_branch
      %18 = sbr.rel (%p16) target = $region8
    $region5: #{tpu_custom_call.1} parent=1 // loop_body
      %s20 = ssub.s32 %s15, 1
      %s21 = ssub.s32 %s15, 2
      %s28 = sadd.s32 1, %s23
      %p29 = scmp.ge.s32.totalorder %s28, 1
      %s30 = scalar_select %p29, 0, %s28
      %s31 = sadd.s32 1, %s22
      %s32 = scalar_select %p29, %s31, %s22
      %p33 = scmp.ge.s32.totalorder %s32, 2
      %s34 = scalar_select %p33, 0, %s32
      %s35 = ssub.s32 %s22, %s34
      %s36 = ssub.s32 %s23, %s30
      %s37 = sor.u32 %s35, %s36
      %p38 = scmp.eq.s32.totalorder %s37, 0
      %s40 = sadd.s32 %s39, 1
      %s41 = scalar_select %p38, %s39, %s40
      %p44 = pneg %p38
      %p45 = scmp.eq.s32.totalorder %s15, 1
      %p46 = por %p44, %p45
      %p47 = scmp.ne.s32.totalorder %s39, %s42
      %p48 = scmp.eq.s32.totalorder %s15, 0
      %p49 = por %p47, %p48
      %p50 = scmp.ne.s32.totalorder %s39, %s42
      %p51 = scmp.eq.s32.totalorder %s20, 1
      %p52 = por %p50, %p51
      %p53 = scmp.ne.s32.totalorder %s42, %s43
      %p54 = scmp.eq.s32.totalorder %s20, 0
      %p55 = por %p53, %p54
      %p56 = scmp.ne.s32.totalorder %s42, %s43
      %p57 = scmp.eq.s32.totalorder %s21, 1
      %p58 = por %p56, %p57
      %p60 = scmp.ne.s32.totalorder %s43, %s59
      %p61 = scmp.eq.s32.totalorder %s21, 0
      %p62 = por %p60, %p61
      %s64 = sadd.s32 %s63, 1
      %p67 = scmp.eq.s32.totalorder %s15, 1
      %p68 = scmp.ne.s32.totalorder %s63, %s65
      %p69 = scmp.eq.s32.totalorder %s15, 0
      %p70 = por %p68, %p69
      %p71 = scmp.ne.s32.totalorder %s63, %s65
      %p72 = scmp.eq.s32.totalorder %s20, 1
      %p73 = por %p71, %p72
      %p74 = scmp.ne.s32.totalorder %s65, %s66
      %p75 = scmp.eq.s32.totalorder %s20, 0
      %p76 = por %p74, %p75
      %p77 = scmp.ne.s32.totalorder %s65, %s66
      %p78 = scmp.eq.s32.totalorder %s21, 1
      %p79 = por %p77, %p78
      %p81 = scmp.ne.s32.totalorder %s66, %s80
      %p82 = scmp.eq.s32.totalorder %s21, 0
      %p83 = por %p81, %p82
      %s85 = sadd.s32 %s84, 1
      %p88 = scmp.eq.s32.totalorder %s15, 1
      %p89 = scmp.ne.s32.totalorder %s84, %s86
      %p90 = scmp.eq.s32.totalorder %s15, 0
      %p91 = por %p89, %p90
      %p92 = scmp.ne.s32.totalorder %s84, %s86
      %p93 = scmp.eq.s32.totalorder %s20, 1
      %p94 = por %p92, %p93
      %p95 = scmp.ne.s32.totalorder %s86, %s87
      %p96 = scmp.eq.s32.totalorder %s20, 0
      %p97 = por %p95, %p96
      %p98 = scmp.ne.s32.totalorder %s86, %s87
      %p99 = scmp.eq.s32.totalorder %s21, 1
      %p100 = por %p98, %p99
      %p102 = scmp.ne.s32.totalorder %s87, %s101
      %p103 = scmp.eq.s32.totalorder %s21, 0
      %p104 = por %p102, %p103
      %s105 = ssub.s32 %s22, %s34
      %s106 = ssub.s32 %s23, %s30
      %s107 = sor.u32 %s105, %s106
      %p108 = scmp.eq.s32.totalorder %s107, 0
      %s110 = sadd.s32 %s109, 1
      %s111 = scalar_select %p108, %s109, %s110
      %p114 = pneg %p108
      %p115 = scmp.eq.s32.totalorder %s15, 1
      %p116 = por %p114, %p115
      %p117 = scmp.ne.s32.totalorder %s109, %s112
      %p118 = scmp.eq.s32.totalorder %s15, 0
      %p119 = por %p117, %p118
      %p120 = scmp.ne.s32.totalorder %s109, %s112
      %p121 = scmp.eq.s32.totalorder %s20, 1
      %p122 = por %p120, %p121
      %p123 = scmp.ne.s32.totalorder %s112, %s113
      %p124 = scmp.eq.s32.totalorder %s20, 0
      %p125 = por %p123, %p124
      %p126 = scmp.ne.s32.totalorder %s112, %s113
      %p127 = scmp.eq.s32.totalorder %s21, 1
      %p128 = por %p126, %p127
      %p130 = scmp.ne.s32.totalorder %s113, %s129
      %p131 = scmp.eq.s32.totalorder %s21, 0
      %p132 = por %p130, %p131
      %p133 = scmp.le.s32.totalorder 1, %s15
      %p134 = scmp.lt.s32.totalorder %s15, 3
      %p135 = pnand %p133, %p134
      %p136 = pneg %p135
      // Predicated region
      $region9: #{tpu_custom_call.1} parent=5 // pred_check
        _
      $region10: #{tpu_custom_call.1} parent=5 // pred_check_branch
        %138 = sbr.rel (%p135) target = $region12
      $region11: #{tpu_custom_call.1} parent=5 // pred_region
        %s139 = ssub.s32 %s15, 1
        // Predicated region
        $region13: #{tpu_custom_call.1} parent=11 // pred_check
          %p140 = pneg %p76
        $region14: #{tpu_custom_call.1} parent=11 // pred_check_branch
          %142 = sbr.rel (%p140) target = $region16
        $region15: #{tpu_custom_call.1} parent=11 // pred_region
          _
        $region16: #{tpu_custom_call.1} parent=11 // pred_fallthru
          _
        // Predicated region
        $region17: #{tpu_custom_call.1} parent=11 // pred_check
          %p143 = pneg %p97
        $region18: #{tpu_custom_call.1} parent=11 // pred_check_branch
          %145 = sbr.rel (%p143) target = $region20
        $region19: #{tpu_custom_call.1} parent=11 // pred_region
          _
        $region20: #{tpu_custom_call.1} parent=11 // pred_fallthru
          _
      $region12: #{tpu_custom_call.1} parent=5 // pred_fallthru
        _
      %p146 = scmp.lt.s32.totalorder %s15, 2
      // Predicated region
      $region21: #{tpu_custom_call.1} parent=5 // pred_check
        %p147 = pneg %p146
      $region22: #{tpu_custom_call.1} parent=5 // pred_check_branch
        %149 = sbr.rel (%p147) target = $region24
      $region23: #{tpu_custom_call.1} parent=5 // pred_region
        // Predicated region
        $region25: #{tpu_custom_call.1} parent=23 // pred_check
          %p150 = pneg %p49
        $region26: #{tpu_custom_call.1} parent=23 // pred_check_branch
          %152 = sbr.rel (%p150) target = $region28
        $region27: #{tpu_custom_call.1} parent=23 // pred_region
          %s153 = sand.u32 %s39, 1
          %s154 = scalar_lea.sflag [#allocation3], %s153
          %s155 = sand.u32 %s39, 1
          %s156 = smul.addr %s155, 64
          %s157 = scalar_lea.vmem [#allocation2], %s156
          %s158 = smul.u32 2, %s23
          %160 = vsyncadd %s154, 0
          %s161 = smul.addr %s22, 8
          %s162 = sadd.s32 %s158, %s161
          %s163 = smul.addr %s162, 8
          %s164 = scalar_lea.hbm %s0, %s163
          %s165 = sshll.u32 %s164, 4
          %s166 = int_to_ptr.hbm [resolvable:$true] %s165
          %s167 = sshll.u32 %s157, 4
          %s168 = int_to_ptr.vmem [resolvable:$true] %s167
          %173 = dma.hbm_to_vmem [thread:$0]  %s166, 1024, %s168, %s154, 256, 256, 16
        $region28: #{tpu_custom_call.1} parent=23 // pred_fallthru
          _
      $region24: #{tpu_custom_call.1} parent=5 // pred_fallthru
        _
      %p174 = scmp.le.s32.totalorder 1, %s15
      %p175 = scmp.lt.s32.totalorder %s15, 3
      %p176 = pnand %p174, %p175
      %p177 = pneg %p176
      // Predicated region
      $region29: #{tpu_custom_call.1} parent=5 // pred_check
        _
      $region30: #{tpu_custom_call.1} parent=5 // pred_check_branch
        %179 = sbr.rel (%p176) target = $region32
      $region31: #{tpu_custom_call.1} parent=5 // pred_region
        %s180 = ssub.s32 %s15, 1
        %s181 = sand.u32 %s42, 1
        %s182 = scalar_lea.sflag [#allocation3], %s181
        %s183 = sand.u32 %s42, 1
        %s184 = smul.addr %s183, 64
        %s185 = scalar_lea.vmem [#allocation2], %s184
        // Predicated region
        $region33: #{tpu_custom_call.1} parent=31 // pred_check
          %p186 = pneg %p55
        $region34: #{tpu_custom_call.1} parent=31 // pred_check_branch
          %188 = sbr.rel (%p186) target = $region36
        $region35: #{tpu_custom_call.1} parent=31 // pred_region
          %190 = dma.done %s182, 1024
        $region36: #{tpu_custom_call.1} parent=31 // pred_fallthru
          _
        %s191 = sand.u32 %s42, 1
        %s192 = scalar_lea.sflag [#allocation3], %s191
        %s193 = sand.u32 %s42, 1
        %s194 = smul.addr %s193, 64
        %s195 = scalar_lea.vmem [#allocation2], %s194
        %p196 = pneg %p55
        %p197 = pneg %p52
        %p198 = pneg %p76
        %p199 = pneg %p73
        %p200 = pneg %p97
        %p201 = pneg %p94
        %p202 = pneg %p125
        %p203 = pneg %p122
        %s204 = sand.u32 %s112, 1
        %s205 = scalar_lea.sflag [#allocation4], %s204
        %s206 = sand.u32 %s112, 1
        %s207 = smul.addr %s206, 64
        %s208 = scalar_lea.vmem [#allocation5], %s207
        %s209 = smul.u32 2, %s25
        %s210 = smul.u32 2, %s25
        %v211 = vld [vmem:[%s1] sm:$0xf]
        %v212 = vld [vmem:[%s185] sm:$0xff]
        %v213 = vld [vmem:[%s185 + $0x8] sm:$0xff]
        %v214 = vld [vmem:[%s185 + $0x10] sm:$0xff]
        %v215 = vld [vmem:[%s185 + $0x18] sm:$0xff]
        %v216 = vld [vmem:[%s185 + $0x20] sm:$0xff]
        %v217 = vld [vmem:[%s185 + $0x28] sm:$0xff]
        %v218 = vld [vmem:[%s185 + $0x30] sm:$0xff]
        %v219 = vld [vmem:[%s185 + $0x38] sm:$0xff]
        %vm220 = vcmask 261120
        %v222 = vsel %vm220, %v211, 0
        %224 = vmatpush.msra.mxu0 0.0
        %225 = vmatpush.msra.mxu0 0.0
        %226 = vmatpush.msra.mxu0 0.0
        %227 = vmatpush.msra.mxu0 0.0
        %228 = vmatpush.msra.mxu0 0.0
        %229 = vmatpush.msra.mxu0 0.0
        %230 = vmatpush.msra.mxu0 0.0
        %231 = vmatpush.msra.mxu0 0.0
        %232 = vmatpush.msra.mxu0 0.0
        %233 = vmatpush.msra.mxu0 0.0
        %234 = vmatpush.msra.mxu0 0.0
        %235 = vmatpush.msra.mxu0 0.0
        %236 = vmatpush.msra.mxu0 %v218
        %237 = vmatpush.msra.mxu0 %v216
        %238 = vmatpush.msra.mxu0 %v214
        %239 = vmatpush.msra.mxu0 %v212
        %240 = vmatmul.f32.gmra.mxu0 %v222
        %v241 = vpop.f32.mrf.mxu0
        %v242 = vadd.f32 0.0, %v241
        %243 = vdwg.mxu0
        %244 = vmatpush.msra.mxu0 0.0
        %245 = vmatpush.msra.mxu0 0.0
        %246 = vmatpush.msra.mxu0 0.0
        %247 = vmatpush.msra.mxu0 0.0
        %248 = vmatpush.msra.mxu0 0.0
        %249 = vmatpush.msra.mxu0 0.0
        %250 = vmatpush.msra.mxu0 0.0
        %251 = vmatpush.msra.mxu0 0.0
        %252 = vmatpush.msra.mxu0 0.0
        %253 = vmatpush.msra.mxu0 0.0
        %254 = vmatpush.msra.mxu0 0.0
        %255 = vmatpush.msra.mxu0 0.0
        %256 = vmatpush.msra.mxu0 %v219
        %257 = vmatpush.msra.mxu0 %v217
        %258 = vmatpush.msra.mxu0 %v215
        %259 = vmatpush.msra.mxu0 %v213
        %260 = vmatmul.f32.gmra.mxu0 %v222
        %v261 = vpop.f32.mrf.mxu0
        %v262 = vadd.f32 0.0, %v261
        %263 = vdwg.mxu0
        %v264 = vmax.f32 %v242, 0.0
        %v265 = vmax.f32 %v262, 0.0
        %v266 = vld [vmem:[%s2] sm:$0xff]
        %v267 = vld [vmem:[%s2 + $0x8] sm:$0xff]
        %v268 = vld [vmem:[%s2 + $0x10] sm:$0xff]
        %v269 = vld [vmem:[%s2 + $0x18] sm:$0xff]
        %vm270 = vcmask 31744
        %v272 = vsel %vm270, %v266, 0
        %v275 = vsel %vm270, %v267, 0
        %v278 = vsel %vm270, %v268, 0
        %v281 = vsel %vm270, %v269, 0
        %vm283 = vcmask 1043456
        %v285 = vsel %vm283, %v264, 0
        %v288 = vsel %vm283, %v265, 0
        %290 = vmatpush.msra.mxu0 0.0
        %291 = vmatpush.msra.mxu0 0.0
        %292 = vmatpush.msra.mxu0 0.0
        %293 = vmatpush.msra.mxu0 0.0
        %294 = vmatpush.msra.mxu0 0.0
        %295 = vmatpush.msra.mxu0 0.0
        %296 = vmatpush.msra.mxu0 0.0
        %297 = vmatpush.msra.mxu0 0.0
        %298 = vmatpush.msra.mxu0 0.0
        %299 = vmatpush.msra.mxu0 0.0
        %300 = vmatpush.msra.mxu0 0.0
        %301 = vmatpush.msra.mxu0 0.0
        %302 = vmatpush.msra.mxu0 0.0
        %303 = vmatpush.msra.mxu0 0.0
        %304 = vmatpush.msra.mxu0 0.0
        %305 = vmatpush.msra.mxu0 %v285
        %306 = vmatmul.f32.gmra.mxu0 %v272
        %v307 = vpop.f32.mrf.mxu0
        %v308 = vadd.f32 0.0, %v307
        %309 = vmatmul.f32.gmra.mxu0 %v275
        %v310 = vpop.f32.mrf.mxu0
        %v311 = vadd.f32 0.0, %v310
        %312 = vmatmul.f32.gmra.mxu0 %v278
        %v313 = vpop.f32.mrf.mxu0
        %v314 = vadd.f32 0.0, %v313
        %315 = vmatmul.f32.gmra.mxu0 %v281
        %v316 = vpop.f32.mrf.mxu0
        %v317 = vadd.f32 0.0, %v316
        %318 = vdwg.mxu0
        %319 = vmatpush.msra.mxu0 0.0
        %320 = vmatpush.msra.mxu0 0.0
        %321 = vmatpush.msra.mxu0 0.0
        %322 = vmatpush.msra.mxu0 0.0
        %323 = vmatpush.msra.mxu0 0.0
        %324 = vmatpush.msra.mxu0 0.0
        %325 = vmatpush.msra.mxu0 0.0
        %326 = vmatpush.msra.mxu0 0.0
        %327 = vmatpush.msra.mxu0 0.0
        %328 = vmatpush.msra.mxu0 0.0
        %329 = vmatpush.msra.mxu0 0.0
        %330 = vmatpush.msra.mxu0 0.0
        %331 = vmatpush.msra.mxu0 0.0
        %332 = vmatpush.msra.mxu0 0.0
        %333 = vmatpush.msra.mxu0 0.0
        %334 = vmatpush.msra.mxu0 %v288
        %335 = vmatmul.f32.gmra.mxu0 %v272
        %v336 = vpop.f32.mrf.mxu0
        %v337 = vadd.f32 0.0, %v336
        %338 = vmatmul.f32.gmra.mxu0 %v275
        %v339 = vpop.f32.mrf.mxu0
        %v340 = vadd.f32 0.0, %v339
        %341 = vmatmul.f32.gmra.mxu0 %v278
        %v342 = vpop.f32.mrf.mxu0
        %v343 = vadd.f32 0.0, %v342
        %344 = vmatmul.f32.gmra.mxu0 %v281
        %v345 = vpop.f32.mrf.mxu0
        %v346 = vadd.f32 0.0, %v345
        %347 = vdwg.mxu0
        %v348 = vmul.f32 %v308, 0.5
        %v349 = vmul.f32 %v337, 0.5
        %v350 = vmul.f32 %v311, 0.5
        %v351 = vmul.f32 %v340, 0.5
        %v352 = vmul.f32 %v314, 0.5
        %v353 = vmul.f32 %v343, 0.5
        %v354 = vmul.f32 %v317, 0.5
        %v355 = vmul.f32 %v346, 0.5
        %v356 = vtanh.pop %v348
        %v357 = vtanh.pop %v349
        %v358 = vtanh.pop %v350
        %v359 = vtanh.pop %v351
        %v360 = vtanh.pop %v352
        %v361 = vtanh.pop %v353
        %v362 = vtanh.pop %v354
        %v363 = vtanh.pop %v355
        %v364 = vadd.f32 %v356, 1.0
        %v365 = vadd.f32 %v357, 1.0
        %v366 = vadd.f32 %v358, 1.0
        %v367 = vadd.f32 %v359, 1.0
        %v368 = vadd.f32 %v360, 1.0
        %v369 = vadd.f32 %v361, 1.0
        %v370 = vadd.f32 %v362, 1.0
        %v371 = vadd.f32 %v363, 1.0
        %v372 = vmul.f32 %v364, 0.5
        %v373 = vmul.f32 %v365, 0.5
        %v374 = vmul.f32 %v366, 0.5
        %v375 = vmul.f32 %v367, 0.5
        %v376 = vmul.f32 %v368, 0.5
        %v377 = vmul.f32 %v369, 0.5
        %v378 = vmul.f32 %v370, 0.5
        %v379 = vmul.f32 %v371, 0.5
        %v380 = vmul.f32 %v212, %v372
        %v381 = vmul.f32 %v213, %v373
        %v382 = vmul.f32 %v214, %v374
        %v383 = vmul.f32 %v215, %v375
        %v384 = vmul.f32 %v216, %v376
        %v385 = vmul.f32 %v217, %v377
        %v386 = vmul.f32 %v218, %v378
        %v387 = vmul.f32 %v219, %v379
        %388 = vst [vmem:[%s208] sm:$0xff] %v380
        %389 = vst [vmem:[%s208 + $0x8] sm:$0xff] %v381
        %390 = vst [vmem:[%s208 + $0x10] sm:$0xff] %v382
        %391 = vst [vmem:[%s208 + $0x18] sm:$0xff] %v383
        %392 = vst [vmem:[%s208 + $0x20] sm:$0xff] %v384
        %393 = vst [vmem:[%s208 + $0x28] sm:$0xff] %v385
        %394 = vst [vmem:[%s208 + $0x30] sm:$0xff] %v386
        %395 = vst [vmem:[%s208 + $0x38] sm:$0xff] %v387
        %s396 = sand.u32 %s112, 1
        %s397 = scalar_lea.sflag [#allocation4], %s396
        %s398 = sand.u32 %s112, 1
        %s399 = smul.addr %s398, 64
        %s400 = scalar_lea.vmem [#allocation5], %s399
        // Predicated region
        $region37: #{tpu_custom_call.1} parent=31 // pred_check
          %p401 = pneg %p122
        $region38: #{tpu_custom_call.1} parent=31 // pred_check_branch
          %403 = sbr.rel (%p401) target = $region40
        $region39: #{tpu_custom_call.1} parent=31 // pred_region
          %s404 = smul.u32 2, %s25
          %406 = vsyncadd %s397, 0
          %s407 = smul.addr %s24, 8
          %s408 = sadd.s32 %s404, %s407
          %s409 = smul.addr %s408, 8
          %s410 = scalar_lea.hbm %s3, %s409
          %s411 = sshll.u32 %s400, 4
          %s412 = int_to_ptr.vmem [resolvable:$true] %s411
          %s413 = sshll.u32 %s410, 4
          %s414 = int_to_ptr.hbm [resolvable:$true] %s413
          %419 = dma.vmem_to_hbm [thread:$0]  %s412, 1024, %s414, %s397, 256, 256, 16
        $region40: #{tpu_custom_call.1} parent=31 // pred_fallthru
          _
      $region32: #{tpu_custom_call.1} parent=5 // pred_fallthru
        _
      %p420 = scmp.le.s32.totalorder 2, %s15
      // Predicated region
      $region41: #{tpu_custom_call.1} parent=5 // pred_check
        %p421 = pneg %p420
      $region42: #{tpu_custom_call.1} parent=5 // pred_check_branch
        %423 = sbr.rel (%p421) target = $region44
      $region43: #{tpu_custom_call.1} parent=5 // pred_region
        %s424 = ssub.s32 %s15, 2
        // Predicated region
        $region45: #{tpu_custom_call.1} parent=43 // pred_check
          %p425 = pneg %p128
        $region46: #{tpu_custom_call.1} parent=43 // pred_check_branch
          %427 = sbr.rel (%p425) target = $region48
        $region47: #{tpu_custom_call.1} parent=43 // pred_region
          %s428 = sand.u32 %s113, 1
          %s429 = scalar_lea.sflag [#allocation4], %s428
          %s430 = sand.u32 %s113, 1
          %s431 = smul.addr %s430, 64
          %s432 = scalar_lea.vmem [#allocation5], %s431
          %434 = dma.done %s429, 1024
        $region48: #{tpu_custom_call.1} parent=43 // pred_fallthru
          _
      $region44: #{tpu_custom_call.1} parent=5 // pred_fallthru
        _
    $region6: #{tpu_custom_call.1} parent=1 // loop_footer
      %s19 = sadd.s32 1, %s15
    $region7: #{tpu_custom_call.1} parent=1 // loop_footer_branch
      %14 = sbr.rel target = $region3
    $region8: #{tpu_custom_call.1} parent=1 // loop_exit
      _
    %435 = vsyncpa [#allocation3], 1
    %s436 = scalar_lea.sflag [#allocation3], 1
    %437 = vsyncpa %s436, 1
    %438 = vsyncpa [#allocation4], 1
    %s439 = scalar_lea.sflag [#allocation4], 1
    %440 = vsyncpa %s439, 1

</llo_original>
